<compile_context>
chip_gen: v6e
topology: v6e:2x2x1
jax: 0.10.0
libtpu: 0.0.40
codegen_flags: <defaults>
</compile_context>

<pallas_src>
import jax
import jax.numpy as jnp
from jax.experimental import pallas as pl
from jax.experimental.pallas import tpu as pltpu


def _round_up(x, m):
    return (x + m - 1) // m * m


def _inventory_encoder_kernel(x_ref, w_ref, b_ref, o_ref):
    # x_ref : (TA, K)  native dtype, VMEM -- one tile of flattened inventories
    # w_ref : (K, 1)   VMEM             -- mean-folded weight column (resident)
    # b_ref : (1, 1)   f32, SMEM        -- mean-folded bias scalar
    # o_ref : (TA, 1)  f32, VMEM        -- per-tile output
    # Canonical A @ B matvec: big operand stays in natural layout (no XLU
    # transpose of the (TA, K) tile); f32 accumulation on the MXU.
    y = jnp.dot(x_ref[...], w_ref[...], preferred_element_type=jnp.float32)
    o_ref[...] = y + b_ref[0, 0]


def fold_inventory_encoder_params(weight, bias):
    """Fold the post-linear mean into the parameters (do this ONCE at init).

    weight: (input_size, 12*hidden_size)  -- PyTorch fc.weight layout
    bias  : (input_size,)
    returns (w_col (K, 1) f32, b_mean (1, 1) f32)
    """
    assert weight.ndim == 2 and bias.shape == (weight.shape[0],), (
        "expected PyTorch fc.weight layout (input_size, 12*hidden) and "
        "bias (input_size,)")
    fan_in = weight.shape[1]
    w_col = jnp.mean(weight.astype(jnp.float32), axis=0).reshape(fan_in, 1)
    b_mean = jnp.mean(bias.astype(jnp.float32)).reshape(1, 1)
    return w_col, b_mean


def inventory_encoder_forward(inventory, w_col, b_mean, *,
                              max_tile_agents=2048, min_pallas_agents=64):
    """inventory: (agents, items, hidden)
       w_col    : (items*hidden, 1) f32   (from fold_inventory_encoder_params)
       b_mean   : (1, 1) f32
       returns  : (agents,) f32
    """
    agents, items, hidden = inventory.shape
    k = items * hidden
    assert w_col.shape == (k, 1), (
        "w_col fan-in mismatch: was the weight folded along the wrong axis?")

    # Keep bf16 inputs in bf16 (halves the dominant HBM read); anything else
    # goes to f32.
    if inventory.dtype not in (jnp.float32, jnp.bfloat16):
        inventory = inventory.astype(jnp.float32)
    x = inventory.reshape(agents, k)  # row-major flatten == torch .view
    w = w_col.astype(x.dtype) if x.dtype == jnp.bfloat16 else w_col

    # Small-shape bypass: pure dispatch overhead territory; let XLA fuse it.
    if agents < min_pallas_agents:
        y = jnp.dot(x, w, preferred_element_type=jnp.float32)
        return (y + b_mean[0, 0]).reshape(agents)

    # --- Tiling over the agents axis ------------------------------------
    sub = 16 if x.dtype == jnp.bfloat16 else 8          # sublane multiple
    num_tiles = max(2, pl.cdiv(agents, max_tile_agents))
    if num_tiles % 2:                                    # even -> both v7x TCs busy
        num_tiles += 1
    ta = _round_up(pl.cdiv(agents, num_tiles), sub)      # balanced tile size
    grid = pl.cdiv(agents, ta)                           # non-divisible grid: no pad

    # Defensive scoped-VMEM headroom (matters on v5e's 16 MiB default if the
    # caller raises max_tile_agents); costs nothing otherwise.
    x_tile_bytes = ta * k * x.dtype.itemsize
    vmem_limit = min(100 << 20, max(32 << 20, 2 * x_tile_bytes + (4 << 20)))

    out = pl.pallas_call(
        _inventory_encoder_kernel,
        out_shape=jax.ShapeDtypeStruct((agents, 1), jnp.float32),
        grid_spec=pltpu.PrefetchScalarGridSpec(
            num_scalar_prefetch=0,
            grid=(grid,),
            in_specs=[
                pl.BlockSpec((ta, k), lambda i: (i, 0)),             # x tile (pipelined)
                pl.BlockSpec((k, 1), lambda i: (0, 0)),              # weight column (resident)
                pl.BlockSpec(memory_space=pltpu.MemorySpace.SMEM),   # bias scalar
            ],
            out_specs=pl.BlockSpec((ta, 1), lambda i: (i, 0)),
        ),
        compiler_params=pltpu.CompilerParams(
            dimension_semantics=("parallel",),   # shard agent tiles across TCs
            vmem_limit_bytes=vmem_limit,
        ),
    )(x, w, b_mean)

    return out.reshape(agents)


def reference_forward(inventory, weight, bias):
    agents, items, hidden = inventory.shape
    x = inventory.reshape(agents, items * hidden)
    y = x @ weight.T + bias
    return y.mean(axis=1)


if __name__ == "__main__":
    # Shapes consistent with the module: items must be 12 (12 * hidden_size).
    hidden_size = 32
    items = 12
    input_size = 64
    fan_in = items * hidden_size  # 384

    key = jax.random.PRNGKey(0)
    k_w, k_b, k1, k2, k3 = jax.random.split(key, 5)

    # Deterministic parameter init (mimic PyTorch Linear's uniform init bounds).
    bound = 1.0 / (fan_in ** 0.5)
    weight = jax.random.uniform(k_w, (input_size, fan_in), jnp.float32,
                                minval=-bound, maxval=bound)
    bias = jax.random.uniform(k_b, (input_size,), jnp.float32,
                              minval=-bound, maxval=bound)

    # Fold the mean into the params once (not per call).
    w_col, b_mean = fold_inventory_encoder_params(weight, bias)

    # Mean-folding reassociates the fp32 sums -> allow ~1e-6-level differences.
    ATOL, RTOL = 1e-4, 1e-5

    # Case 1: tiny agent count -> small-shape bypass (plain fused XLA dot).
    a1 = 8
    inv1 = jax.random.normal(k1, (a1, items, hidden_size), jnp.float32)
    out1 = jax.block_until_ready(inventory_encoder_forward(inv1, w_col, b_mean))
    ref1 = reference_forward(inv1, weight, bias)
    assert out1.shape == (a1,)
    assert jnp.allclose(out1, ref1, atol=ATOL, rtol=RTOL), (out1, ref1)

    # Case 2: Pallas path, agents split evenly into two tiles (grid=2).
    a2 = 96
    inv2 = jax.random.normal(k2, (a2, items, hidden_size), jnp.float32)
    out2 = jax.block_until_ready(inventory_encoder_forward(inv2, w_col, b_mean))
    ref2 = reference_forward(inv2, weight, bias)
    assert out2.shape == (a2,)
    assert jnp.allclose(out2, ref2, atol=ATOL, rtol=RTOL), (out2, ref2)

    # Case 3: Pallas path, ragged last tile (non-divisible grid, no padding).
    a3 = 173
    inv3 = jax.random.normal(k3, (a3, items, hidden_size), jnp.float32)
    out3 = jax.block_until_ready(inventory_encoder_forward(inv3, w_col, b_mean))
    ref3 = reference_forward(inv3, weight, bias)
    assert out3.shape == (a3,)
    assert jnp.allclose(out3, ref3, atol=ATOL, rtol=RTOL), (out3, ref3)

    print("KERNEL_OK")
</pallas_src>

<mosaic_0001>
module attributes {stable_mosaic.version = 11 : i64} {
  func.func @_inventory_encoder_kernel(%arg0: i32, %arg1: memref<48x384xf32, #tpu.memory_space<vmem>>, %arg2: memref<384x1xf32, #tpu.memory_space<vmem>>, %arg3: memref<1x1xf32, #tpu.memory_space<smem>>, %arg4: memref<48x1xf32, #tpu.memory_space<vmem>>) attributes {dimension_semantics = [#tpu.dimension_semantics<parallel>], iteration_bounds = array<i64: 2>, scalar_prefetch = 0 : i64, scratch_operands = 0 : i64, tpu.core_type = #tpu.core_type<tc>, window_params = [{transform_indices = @transform_0, window_bounds = array<i64: 48, 384>}, {pipeline_mode = #tpu.pipeline_mode<synchronous>, transform_indices = @transform_1, window_bounds = array<i64: 384, 1>}, {transform_indices = @transform_2, window_bounds = array<i64: 1, 1>}, {transform_indices = @transform_3, window_bounds = array<i64: 48, 1>}]} {
    %c0 = arith.constant 0 : index
    %c0_0 = arith.constant 0 : index
    %0 = vector.load %arg1[%c0, %c0_0] : memref<48x384xf32, #tpu.memory_space<vmem>>, vector<48x384xf32>
    %c0_1 = arith.constant 0 : index
    %c0_2 = arith.constant 0 : index
    %1 = vector.load %arg2[%c0_1, %c0_2] : memref<384x1xf32, #tpu.memory_space<vmem>>, vector<384x1xf32>
    %cst = arith.constant dense<0.000000e+00> : vector<48x1xf32>
    %2 = tpu.matmul %0, %1, %cst {dimension_numbers = #tpu.dot_dimension_numbers<[1], [0], [0], [1], [0, 0, 1, 1], [], []>} : vector<48x384xf32>, vector<384x1xf32>, vector<48x1xf32> -> vector<48x1xf32>
    %c0_3 = arith.constant 0 : index
    %c0_4 = arith.constant 0 : index
    %3 = memref.load %arg3[%c0_3, %c0_4] : memref<1x1xf32, #tpu.memory_space<smem>>
    %4 = vector.broadcast %3 : f32 to vector<48x1xf32>
    %5 = arith.addf %2, %4 : vector<48x1xf32>
    %c0_5 = arith.constant 0 : index
    %c0_6 = arith.constant 0 : index
    %6 = vector.load %arg4[%c0_5, %c0_6] : memref<48x1xf32, #tpu.memory_space<vmem>>, vector<48x1xf32>
    tpu.vector_store %arg4[%c0_5, %c0_6], %5 {strides = array<i32>} : memref<48x1xf32, #tpu.memory_space<vmem>>, vector<48x1xf32>,
    return
  }
  func.func @transform_0(%arg0: i32) -> (i32, i32) {
    %c0_i32 = arith.constant 0 : i32
    %c0_i32_0 = arith.constant 0 : i32
    return %arg0, %c0_i32 : i32, i32
  }
  func.func @transform_1(%arg0: i32) -> (i32, i32) {
    %c0_i32 = arith.constant 0 : i32
    %c0_i32_0 = arith.constant 0 : i32
    %c0_i32_1 = arith.constant 0 : i32
    return %c0_i32, %c0_i32_0 : i32, i32
  }
  func.func @transform_2(%arg0: i32) -> (i32, i32) {
    %c0_i32 = arith.constant 0 : i32
    %c0_i32_0 = arith.constant 0 : i32
    %c0_i32_1 = arith.constant 0 : i32
    return %c0_i32, %c0_i32_0 : i32, i32
  }
  func.func @transform_3(%arg0: i32) -> (i32, i32) {
    %c0_i32 = arith.constant 0 : i32
    %c0_i32_0 = arith.constant 0 : i32
    return %arg0, %c0_i32 : i32, i32
  }
}

</mosaic_0001>

<llo_original>
// kernel: tpu_custom_call.1
$region0: #{tpu_custom_call.1}
  #allocation0 [shape = 'u32[]', space=smem, size = 0x4, offset = 0x4, fixed_abs, tag = 'smem constant byte address 0x4 - core index']
  #allocation1 [shape = 'u32[144,128]{1,0:T(1,128)}', space=vmem, size = 0x12000, scoped, tag = 'internal scratch']
  #allocation2 [shape = 'f32[1,1]{1,0:T(1,128)S(6)}', space=smem, size = 0x200, scoped, tag = 'scoped memory for tpu_custom_call.1']
  %s0 = inlined_call_operand.vmem [shape: f32[96,384], index: 0, kind: input, shape index: {}]
  %s1 = inlined_call_operand.vmem [shape: f32[384,1], index: 1, kind: input, shape index: {}]
  %s2 = inlined_call_operand.<no memory space> [shape: f32[1,1], index: 2, kind: input, shape index: {}]
  %s3 = inlined_call_operand.vmem [shape: f32[96,1], index: 3, kind: output, shape index: {}]
  %s4 = sld [smem:[#allocation0]]
  $region45: #{tpu_custom_call.1} parent=0
    _
  %s6 = ssub.s32 1, %s4
  %s7 = scalar_select 0, %s6, %s4
  %8 = sst [smem:[#allocation2]] %s2
  loop: start=0, step=1, limit=4
  $region2: #{tpu_custom_call.1} parent=0 // loop_pre_header
    _
  $region3: #{tpu_custom_call.1} parent=0 // loop_header
    %s10 = sphi 0, %s14
    %p11 = scmp.ge.s32.totalorder %s10, 4
    %s20 = sphi 0, %s22
    %s23 = sphi 0, %s20
    %s24 = sphi 0, %s23
    %s40 = sphi 0, %s24
    %s44 = sphi 0, %s44
    %s46 = sphi 0, %s44
    %s47 = sphi 0, %s46
    %s61 = sphi 0, %s47
    %s65 = sphi 0, %s65
    %s67 = sphi 0, %s65
    %s68 = sphi 0, %s67
    %s82 = sphi 0, %s68
    %s88 = sphi 0, %s90
    %s91 = sphi 0, %s88
    %s92 = sphi 0, %s91
    %s108 = sphi 0, %s92
  $region4: #{tpu_custom_call.1} parent=0 // loop_header_branch
    %13 = sbr.rel (%p11) target = $region8
  $region5: #{tpu_custom_call.1} parent=0 // loop_body
    %s15 = ssub.s32 %s10, 1
    %s16 = ssub.s32 %s10, 2
    %s17 = sadd.s32 %s10, 1
    %s18 = ssub.s32 %s10, %s17
    %p19 = scmp.eq.s32.totalorder %s18, 0
    %s21 = sadd.s32 %s20, 1
    %s22 = scalar_select %p19, %s20, %s21
    %p25 = pneg %p19
    %p26 = scmp.eq.s32.totalorder %s10, 1
    %p27 = por %p25, %p26
    %p28 = scmp.ne.s32.totalorder %s20, %s23
    %p29 = scmp.eq.s32.totalorder %s10, 0
    %p30 = por %p28, %p29
    %p31 = scmp.ne.s32.totalorder %s20, %s23
    %p32 = scmp.eq.s32.totalorder %s15, 1
    %p33 = por %p31, %p32
    %p34 = scmp.ne.s32.totalorder %s23, %s24
    %p35 = scmp.eq.s32.totalorder %s15, 0
    %p36 = por %p34, %p35
    %p37 = scmp.ne.s32.totalorder %s23, %s24
    %p38 = scmp.eq.s32.totalorder %s16, 1
    %p39 = por %p37, %p38
    %p41 = scmp.ne.s32.totalorder %s24, %s40
    %p42 = scmp.eq.s32.totalorder %s16, 0
    %p43 = por %p41, %p42
    %s45 = sadd.s32 %s44, 1
    %p48 = scmp.eq.s32.totalorder %s10, 1
    %p49 = scmp.ne.s32.totalorder %s44, %s46
    %p50 = scmp.eq.s32.totalorder %s10, 0
    %p51 = por %p49, %p50
    %p52 = scmp.ne.s32.totalorder %s44, %s46
    %p53 = scmp.eq.s32.totalorder %s15, 1
    %p54 = por %p52, %p53
    %p55 = scmp.ne.s32.totalorder %s46, %s47
    %p56 = scmp.eq.s32.totalorder %s15, 0
    %p57 = por %p55, %p56
    %p58 = scmp.ne.s32.totalorder %s46, %s47
    %p59 = scmp.eq.s32.totalorder %s16, 1
    %p60 = por %p58, %p59
    %p62 = scmp.ne.s32.totalorder %s47, %s61
    %p63 = scmp.eq.s32.totalorder %s16, 0
    %p64 = por %p62, %p63
    %s66 = sadd.s32 %s65, 1
    %p69 = scmp.eq.s32.totalorder %s10, 1
    %p70 = scmp.ne.s32.totalorder %s65, %s67
    %p71 = scmp.eq.s32.totalorder %s10, 0
    %p72 = por %p70, %p71
    %p73 = scmp.ne.s32.totalorder %s65, %s67
    %p74 = scmp.eq.s32.totalorder %s15, 1
    %p75 = por %p73, %p74
    %p76 = scmp.ne.s32.totalorder %s67, %s68
    %p77 = scmp.eq.s32.totalorder %s15, 0
    %p78 = por %p76, %p77
    %p79 = scmp.ne.s32.totalorder %s67, %s68
    %p80 = scmp.eq.s32.totalorder %s16, 1
    %p81 = por %p79, %p80
    %p83 = scmp.ne.s32.totalorder %s68, %s82
    %p84 = scmp.eq.s32.totalorder %s16, 0
    %p85 = por %p83, %p84
    %s86 = ssub.s32 %s10, %s17
    %p87 = scmp.eq.s32.totalorder %s86, 0
    %s89 = sadd.s32 %s88, 1
    %s90 = scalar_select %p87, %s88, %s89
    %p93 = pneg %p87
    %p94 = scmp.eq.s32.totalorder %s10, 1
    %p95 = por %p93, %p94
    %p96 = scmp.ne.s32.totalorder %s88, %s91
    %p97 = scmp.eq.s32.totalorder %s10, 0
    %p98 = por %p96, %p97
    %p99 = scmp.ne.s32.totalorder %s88, %s91
    %p100 = scmp.eq.s32.totalorder %s15, 1
    %p101 = por %p99, %p100
    %p102 = scmp.ne.s32.totalorder %s91, %s92
    %p103 = scmp.eq.s32.totalorder %s15, 0
    %p104 = por %p102, %p103
    %p105 = scmp.ne.s32.totalorder %s91, %s92
    %p106 = scmp.eq.s32.totalorder %s16, 1
    %p107 = por %p105, %p106
    %p109 = scmp.ne.s32.totalorder %s92, %s108
    %p110 = scmp.eq.s32.totalorder %s16, 0
    %p111 = por %p109, %p110
    %p112 = scmp.le.s32.totalorder 1, %s10
    %p113 = scmp.lt.s32.totalorder %s10, 3
    %p114 = pnand %p112, %p113
    %p115 = pneg %p114
    // Predicated region
    $region9: #{tpu_custom_call.1} parent=5 // pred_check
      _
    $region10: #{tpu_custom_call.1} parent=5 // pred_check_branch
      %117 = sbr.rel (%p114) target = $region12
    $region11: #{tpu_custom_call.1} parent=5 // pred_region
      %s118 = ssub.s32 %s10, 1
      // Predicated region
      $region13: #{tpu_custom_call.1} parent=11 // pred_check
        %p119 = pneg %p57
      $region14: #{tpu_custom_call.1} parent=11 // pred_check_branch
        %121 = sbr.rel (%p119) target = $region16
      $region15: #{tpu_custom_call.1} parent=11 // pred_region
        _
      $region16: #{tpu_custom_call.1} parent=11 // pred_fallthru
        _
      // Predicated region
      $region17: #{tpu_custom_call.1} parent=11 // pred_check
        %p122 = pneg %p78
      $region18: #{tpu_custom_call.1} parent=11 // pred_check_branch
        %124 = sbr.rel (%p122) target = $region20
      $region19: #{tpu_custom_call.1} parent=11 // pred_region
        _
      $region20: #{tpu_custom_call.1} parent=11 // pred_fallthru
        _
    $region12: #{tpu_custom_call.1} parent=5 // pred_fallthru
      _
    %p125 = scmp.lt.s32.totalorder %s10, 2
    // Predicated region
    $region21: #{tpu_custom_call.1} parent=5 // pred_check
      %p126 = pneg %p125
    $region22: #{tpu_custom_call.1} parent=5 // pred_check_branch
      %128 = sbr.rel (%p126) target = $region24
    $region23: #{tpu_custom_call.1} parent=5 // pred_region
      // Predicated region
      $region25: #{tpu_custom_call.1} parent=23 // pred_check
        %p129 = pneg %p30
      $region26: #{tpu_custom_call.1} parent=23 // pred_check_branch
        %131 = sbr.rel (%p129) target = $region28
      $region27: #{tpu_custom_call.1} parent=23 // pred_region
        %s132 = smul.u32 6, %s10
        %p133 = scmp.lt.s32.totalorder %s132, 11
        %s134 = scalar_select %p133, %s132, 11
        %s135 = smul.addr %s134, 3
        %s136 = smul.addr %s135, 8
        %s137 = scalar_lea.vmem %s0, %s136
        %s138 = smul.u32 6, %s10
      $region28: #{tpu_custom_call.1} parent=23 // pred_fallthru
        _
    $region24: #{tpu_custom_call.1} parent=5 // pred_fallthru
      _
    %p139 = scmp.le.s32.totalorder 1, %s10
    %p140 = scmp.lt.s32.totalorder %s10, 3
    %p141 = pnand %p139, %p140
    %p142 = pneg %p141
    // Predicated region
    $region29: #{tpu_custom_call.1} parent=5 // pred_check
      _
    $region30: #{tpu_custom_call.1} parent=5 // pred_check_branch
      %144 = sbr.rel (%p141) target = $region32
    $region31: #{tpu_custom_call.1} parent=5 // pred_region
      %s145 = ssub.s32 %s10, 1
      %s146 = smul.u32 6, %s15
      %p147 = scmp.lt.s32.totalorder %s146, 11
      %s148 = scalar_select %p147, %s146, 11
      %s149 = smul.addr %s148, 3
      %s150 = smul.addr %s149, 8
      %s151 = scalar_lea.vmem %s0, %s150
      %p152 = pneg %p36
      %p153 = pneg %p33
      %p154 = pneg %p57
      %p155 = pneg %p54
      %p156 = pneg %p78
      %p157 = pneg %p75
      %p158 = pneg %p104
      %p159 = pneg %p101
      %s160 = smul.u32 6, %s15
      %p161 = scmp.lt.s32.totalorder %s160, 11
      %s162 = scalar_select %p161, %s160, 11
      %s163 = smul.addr %s162, 8
      %s164 = scalar_lea.vmem %s3, %s163
      %s165 = smul.u32 6, %s15
      %p166 = scmp.lt.s32.totalorder %s165, 11
      %s167 = scalar_select %p166, %s165, 11
      %s168 = smul.addr %s167, 3
      %s169 = smul.addr %s168, 8
      %s170 = scalar_lea.vmem %s0, %s169
      %s171 = smul.u32 6, %s15
      %s172 = smul.u32 6, %s15
      %p173 = scmp.lt.s32.totalorder %s172, 11
      %s174 = scalar_select %p173, %s172, 11
      %s175 = smul.addr %s174, 8
      %s176 = scalar_lea.vmem %s3, %s175
      %s177 = smul.u32 6, %s15
      %v178 = vld [vmem:[%s170] sm:$0xff]
      %v179 = vld [vmem:[%s170 + $0x8] sm:$0xff]
      %v180 = vld [vmem:[%s170 + $0x10] sm:$0xff]
      %v181 = vld [vmem:[%s170 + $0x18] sm:$0xff]
      %v182 = vld [vmem:[%s170 + $0x20] sm:$0xff]
      %v183 = vld [vmem:[%s170 + $0x28] sm:$0xff]
      %v184 = vld [vmem:[%s170 + $0x30] sm:$0xff]
      %v185 = vld [vmem:[%s170 + $0x38] sm:$0xff]
      %v186 = vld [vmem:[%s170 + $0x40] sm:$0xff]
      %v187 = vld [vmem:[%s170 + $0x48] sm:$0xff]
      %v188 = vld [vmem:[%s170 + $0x50] sm:$0xff]
      %v189 = vld [vmem:[%s170 + $0x58] sm:$0xff]
      %v190 = vld [vmem:[%s170 + $0x60] sm:$0xff]
      %v191 = vld [vmem:[%s170 + $0x68] sm:$0xff]
      %v192 = vld [vmem:[%s170 + $0x70] sm:$0xff]
      %v193 = vld [vmem:[%s170 + $0x78] sm:$0xff]
      %v194 = vld [vmem:[%s170 + $0x80] sm:$0xff]
      %v195 = vld [vmem:[%s170 + $0x88] sm:$0xff]
      %v196 = vld [vmem:[%s1] sm:$0xff]
      %v197 = vld [vmem:[%s1 + $0x8] sm:$0xff]
      %v198 = vld [vmem:[%s1 + $0x10] sm:$0xff]
      %v199 = vld [vmem:[%s1 + $0x18] sm:$0xff]
      %v200 = vld [vmem:[%s1 + $0x20] sm:$0xff]
      %v201 = vld [vmem:[%s1 + $0x28] sm:$0xff]
      %v202 = vld [vmem:[%s1 + $0x30] sm:$0xff]
      %v203 = vld [vmem:[%s1 + $0x38] sm:$0xff]
      %v204 = vld [vmem:[%s1 + $0x40] sm:$0xff]
      %v205 = vld [vmem:[%s1 + $0x48] sm:$0xff]
      %v206 = vld [vmem:[%s1 + $0x50] sm:$0xff]
      %v207 = vld [vmem:[%s1 + $0x58] sm:$0xff]
      %v208 = vld [vmem:[%s1 + $0x60] sm:$0xff]
      %v209 = vld [vmem:[%s1 + $0x68] sm:$0xff]
      %v210 = vld [vmem:[%s1 + $0x70] sm:$0xff]
      %v211 = vld [vmem:[%s1 + $0x78] sm:$0xff]
      %v212 = vld [vmem:[%s1 + $0x80] sm:$0xff]
      %v213 = vld [vmem:[%s1 + $0x88] sm:$0xff]
      %v214 = vld [vmem:[%s1 + $0x90] sm:$0xff]
      %v215 = vld [vmem:[%s1 + $0x98] sm:$0xff]
      %v216 = vld [vmem:[%s1 + $0xa0] sm:$0xff]
      %v217 = vld [vmem:[%s1 + $0xa8] sm:$0xff]
      %v218 = vld [vmem:[%s1 + $0xb0] sm:$0xff]
      %v219 = vld [vmem:[%s1 + $0xb8] sm:$0xff]
      %v220 = vld [vmem:[%s1 + $0xc0] sm:$0xff]
      %v221 = vld [vmem:[%s1 + $0xc8] sm:$0xff]
      %v222 = vld [vmem:[%s1 + $0xd0] sm:$0xff]
      %v223 = vld [vmem:[%s1 + $0xd8] sm:$0xff]
      %v224 = vld [vmem:[%s1 + $0xe0] sm:$0xff]
      %v225 = vld [vmem:[%s1 + $0xe8] sm:$0xff]
      %v226 = vld [vmem:[%s1 + $0xf0] sm:$0xff]
      %v227 = vld [vmem:[%s1 + $0xf8] sm:$0xff]
      %v228 = vld [vmem:[%s1 + $0x100] sm:$0xff]
      %v229 = vld [vmem:[%s1 + $0x108] sm:$0xff]
      %v230 = vld [vmem:[%s1 + $0x110] sm:$0xff]
      %v231 = vld [vmem:[%s1 + $0x118] sm:$0xff]
      %v232 = vld [vmem:[%s1 + $0x120] sm:$0xff]
      %v233 = vld [vmem:[%s1 + $0x128] sm:$0xff]
      %v234 = vld [vmem:[%s1 + $0x130] sm:$0xff]
      %v235 = vld [vmem:[%s1 + $0x138] sm:$0xff]
      %v236 = vld [vmem:[%s1 + $0x140] sm:$0xff]
      %v237 = vld [vmem:[%s1 + $0x148] sm:$0xff]
      %v238 = vld [vmem:[%s1 + $0x150] sm:$0xff]
      %v239 = vld [vmem:[%s1 + $0x158] sm:$0xff]
      %v240 = vld [vmem:[%s1 + $0x160] sm:$0xff]
      %v241 = vld [vmem:[%s1 + $0x168] sm:$0xff]
      %v242 = vld [vmem:[%s1 + $0x170] sm:$0xff]
      %v243 = vld [vmem:[%s1 + $0x178] sm:$0xff]
      %s244 = sld [smem:[#allocation2]]
      %v245 = vstv %s244
      %246 = vmatprep.subr.mxu0 0.0
      %247 = vmatpush1.msra.mxu0 %v211
      %248 = vmatprep.subr.mxu0 0.0
      %249 = vmatpush1.msra.mxu0 %v210
      %250 = vmatprep.subr.mxu0 0.0
      %251 = vmatpush1.msra.mxu0 %v209
      %252 = vmatprep.subr.mxu0 0.0
      %253 = vmatpush1.msra.mxu0 %v208
      %254 = vmatprep.subr.mxu0 0.0
      %255 = vmatpush1.msra.mxu0 %v207
      %256 = vmatprep.subr.mxu0 0.0
      %257 = vmatpush1.msra.mxu0 %v206
      %258 = vmatprep.subr.mxu0 0.0
      %259 = vmatpush1.msra.mxu0 %v205
      %260 = vmatprep.subr.mxu0 0.0
      %261 = vmatpush1.msra.mxu0 %v204
      %262 = vmatprep.subr.mxu0 0.0
      %263 = vmatpush1.msra.mxu0 %v203
      %264 = vmatprep.subr.mxu0 0.0
      %265 = vmatpush1.msra.mxu0 %v202
      %266 = vmatprep.subr.mxu0 0.0
      %267 = vmatpush1.msra.mxu0 %v201
      %268 = vmatprep.subr.mxu0 0.0
      %269 = vmatpush1.msra.mxu0 %v200
      %270 = vmatprep.subr.mxu0 0.0
      %271 = vmatpush1.msra.mxu0 %v199
      %272 = vmatprep.subr.mxu0 0.0
      %273 = vmatpush1.msra.mxu0 %v198
      %274 = vmatprep.subr.mxu0 0.0
      %275 = vmatpush1.msra.mxu0 %v197
      %276 = vmatprep.subr.mxu0 0.0
      %277 = vmatpush1.msra.mxu0 %v196
      %278 = vmatprep.subr.mxu0 0.0
      %279 = vmatpush2.msra.mxu0 %v227
      %280 = vmatprep.subr.mxu0 0.0
      %281 = vmatpush2.msra.mxu0 %v226
      %282 = vmatprep.subr.mxu0 0.0
      %283 = vmatpush2.msra.mxu0 %v225
      %284 = vmatprep.subr.mxu0 0.0
      %285 = vmatpush2.msra.mxu0 %v224
      %286 = vmatprep.subr.mxu0 0.0
      %287 = vmatpush2.msra.mxu0 %v223
      %288 = vmatprep.subr.mxu0 0.0
      %289 = vmatpush2.msra.mxu0 %v222
      %290 = vmatprep.subr.mxu0 0.0
      %291 = vmatpush2.msra.mxu0 %v221
      %292 = vmatprep.subr.mxu0 0.0
      %293 = vmatpush2.msra.mxu0 %v220
      %294 = vmatprep.subr.mxu0 0.0
      %295 = vmatpush2.msra.mxu0 %v219
      %296 = vmatprep.subr.mxu0 0.0
      %297 = vmatpush2.msra.mxu0 %v218
      %298 = vmatprep.subr.mxu0 0.0
      %299 = vmatpush2.msra.mxu0 %v217
      %300 = vmatprep.subr.mxu0 0.0
      %301 = vmatpush2.msra.mxu0 %v216
      %302 = vmatprep.subr.mxu0 0.0
      %303 = vmatpush2.msra.mxu0 %v215
      %304 = vmatprep.subr.mxu0 0.0
      %305 = vmatpush2.msra.mxu0 %v214
      %306 = vmatprep.subr.mxu0 0.0
      %307 = vmatpush2.msra.mxu0 %v213
      %308 = vmatprep.subr.mxu0 0.0
      %309 = vmatpush2.msra.mxu0 %v212
      %310 = vmatprep.mubr.f32.mxu0 %v179
      %311 = vmatmul.mubr.f32.gmra.mxu0 %v178
      %v312 = vpop.f32.mrf.mxu0
      %v313 = vadd.f32 %v245, %v312
      %v314 = vpop.f32.mrf.mxu0
      %315 = vmatprep.mubr.f32.mxu0 %v182
      %316 = vmatmul.mubr.f32.gmra.mxu0 %v181
      %v317 = vpop.f32.mrf.mxu0
      %v318 = vadd.f32 %v245, %v317
      %v319 = vpop.f32.mrf.mxu0
      %320 = vmatprep.mubr.f32.mxu0 %v185
      %321 = vmatmul.mubr.f32.gmra.mxu0 %v184
      %v322 = vpop.f32.mrf.mxu0
      %v323 = vadd.f32 %v245, %v322
      %v324 = vpop.f32.mrf.mxu0
      %325 = vmatprep.mubr.f32.mxu0 %v188
      %326 = vmatmul.mubr.f32.gmra.mxu0 %v187
      %v327 = vpop.f32.mrf.mxu0
      %v328 = vadd.f32 %v245, %v327
      %v329 = vpop.f32.mrf.mxu0
      %330 = vmatprep.mubr.f32.mxu0 %v191
      %331 = vmatmul.mubr.f32.gmra.mxu0 %v190
      %v332 = vpop.f32.mrf.mxu0
      %v333 = vadd.f32 %v245, %v332
      %v334 = vpop.f32.mrf.mxu0
      %335 = vmatprep.mubr.f32.mxu0 %v194
      %336 = vmatmul.mubr.f32.gmra.mxu0 %v193
      %v337 = vpop.f32.mrf.mxu0
      %v338 = vadd.f32 %v245, %v337
      %v339 = vpop.f32.mrf.mxu0
      %340 = vdwg.mxu0
      %341 = vmatprep.subr.mxu0 0.0
      %342 = vmatpush1.msra.mxu0 %v243
      %343 = vmatprep.subr.mxu0 0.0
      %344 = vmatpush1.msra.mxu0 %v242
      %345 = vmatprep.subr.mxu0 0.0
      %346 = vmatpush1.msra.mxu0 %v241
      %347 = vmatprep.subr.mxu0 0.0
      %348 = vmatpush1.msra.mxu0 %v240
      %349 = vmatprep.subr.mxu0 0.0
      %350 = vmatpush1.msra.mxu0 %v239
      %351 = vmatprep.subr.mxu0 0.0
      %352 = vmatpush1.msra.mxu0 %v238
      %353 = vmatprep.subr.mxu0 0.0
      %354 = vmatpush1.msra.mxu0 %v237
      %355 = vmatprep.subr.mxu0 0.0
      %356 = vmatpush1.msra.mxu0 %v236
      %357 = vmatprep.subr.mxu0 0.0
      %358 = vmatpush1.msra.mxu0 %v235
      %359 = vmatprep.subr.mxu0 0.0
      %360 = vmatpush1.msra.mxu0 %v234
      %361 = vmatprep.subr.mxu0 0.0
      %362 = vmatpush1.msra.mxu0 %v233
      %363 = vmatprep.subr.mxu0 0.0
      %364 = vmatpush1.msra.mxu0 %v232
      %365 = vmatprep.subr.mxu0 0.0
      %366 = vmatpush1.msra.mxu0 %v231
      %367 = vmatprep.subr.mxu0 0.0
      %368 = vmatpush1.msra.mxu0 %v230
      %369 = vmatprep.subr.mxu0 0.0
      %370 = vmatpush1.msra.mxu0 %v229
      %371 = vmatprep.subr.mxu0 0.0
      %372 = vmatpush1.msra.mxu0 %v228
      %373 = vmatprep.subr.mxu0 0.0
      %374 = vmatpush2.msra.mxu0 0.0
      %375 = vmatprep.subr.mxu0 0.0
      %376 = vmatpush2.msra.mxu0 0.0
      %377 = vmatprep.subr.mxu0 0.0
      %378 = vmatpush2.msra.mxu0 0.0
      %379 = vmatprep.subr.mxu0 0.0
      %380 = vmatpush2.msra.mxu0 0.0
      %381 = vmatprep.subr.mxu0 0.0
      %382 = vmatpush2.msra.mxu0 0.0
      %383 = vmatprep.subr.mxu0 0.0
      %384 = vmatpush2.msra.mxu0 0.0
      %385 = vmatprep.subr.mxu0 0.0
      %386 = vmatpush2.msra.mxu0 0.0
      %387 = vmatprep.subr.mxu0 0.0
      %388 = vmatpush2.msra.mxu0 0.0
      %389 = vmatprep.subr.mxu0 0.0
      %390 = vmatpush2.msra.mxu0 0.0
      %391 = vmatprep.subr.mxu0 0.0
      %392 = vmatpush2.msra.mxu0 0.0
      %393 = vmatprep.subr.mxu0 0.0
      %394 = vmatpush2.msra.mxu0 0.0
      %395 = vmatprep.subr.mxu0 0.0
      %396 = vmatpush2.msra.mxu0 0.0
      %397 = vmatprep.subr.mxu0 0.0
      %398 = vmatpush2.msra.mxu0 0.0
      %399 = vmatprep.subr.mxu0 0.0
      %400 = vmatpush2.msra.mxu0 0.0
      %401 = vmatprep.subr.mxu0 0.0
      %402 = vmatpush2.msra.mxu0 0.0
      %403 = vmatprep.subr.mxu0 0.0
      %404 = vmatpush2.msra.mxu0 0.0
      %405 = vmatprep.mubr.f32.mxu0 0.0
      %406 = vmatmul.mubr.f32.gmra.mxu0 %v180
      %v407 = vpop.f32.mrf.mxu0
      %v408 = vadd.f32 %v313, %v407
      %v409 = vpop.f32.mrf.mxu0
      %410 = vmatprep.mubr.f32.mxu0 0.0
      %411 = vmatmul.mubr.f32.gmra.mxu0 %v183
      %v412 = vpop.f32.mrf.mxu0
      %v413 = vadd.f32 %v318, %v412
      %v414 = vpop.f32.mrf.mxu0
      %415 = vmatprep.mubr.f32.mxu0 0.0
      %416 = vmatmul.mubr.f32.gmra.mxu0 %v186
      %v417 = vpop.f32.mrf.mxu0
      %v418 = vadd.f32 %v323, %v417
      %v419 = vpop.f32.mrf.mxu0
      %420 = vmatprep.mubr.f32.mxu0 0.0
      %421 = vmatmul.mubr.f32.gmra.mxu0 %v189
      %v422 = vpop.f32.mrf.mxu0
      %v423 = vadd.f32 %v328, %v422
      %v424 = vpop.f32.mrf.mxu0
      %425 = vmatprep.mubr.f32.mxu0 0.0
      %426 = vmatmul.mubr.f32.gmra.mxu0 %v192
      %v427 = vpop.f32.mrf.mxu0
      %v428 = vadd.f32 %v333, %v427
      %v429 = vpop.f32.mrf.mxu0
      %430 = vmatprep.mubr.f32.mxu0 0.0
      %431 = vmatmul.mubr.f32.gmra.mxu0 %v195
      %v432 = vpop.f32.mrf.mxu0
      %v433 = vadd.f32 %v338, %v432
      %v434 = vpop.f32.mrf.mxu0
      %435 = vdwg.mxu0
      %vm436 = vcmask 7168
      %437 = vst.msk [vmem:[%s176] sm:$0xff] %vm436, %v408
      %438 = vst.msk [vmem:[%s176 + $0x8] sm:$0xff] %vm436, %v413
      %439 = vst.msk [vmem:[%s176 + $0x10] sm:$0xff] %vm436, %v418
      %440 = vst.msk [vmem:[%s176 + $0x18] sm:$0xff] %vm436, %v423
      %441 = vst.msk [vmem:[%s176 + $0x20] sm:$0xff] %vm436, %v428
      %442 = vst.msk [vmem:[%s176 + $0x28] sm:$0xff] %vm436, %v433
      %s443 = smul.u32 6, %s15
      %p444 = scmp.lt.s32.totalorder %s443, 11
      %s445 = scalar_select %p444, %s443, 11
      %s446 = smul.addr %s445, 8
      %s447 = scalar_lea.vmem %s3, %s446
      // Predicated region
      $region33: #{tpu_custom_call.1} parent=31 // pred_check
        %p448 = pneg %p101
      $region34: #{tpu_custom_call.1} parent=31 // pred_check_branch
        %450 = sbr.rel (%p448) target = $region36
      $region35: #{tpu_custom_call.1} parent=31 // pred_region
        %s451 = smul.u32 6, %s15
      $region36: #{tpu_custom_call.1} parent=31 // pred_fallthru
        _
    $region32: #{tpu_custom_call.1} parent=5 // pred_fallthru
      _
    %p452 = scmp.le.s32.totalorder 2, %s10
    // Predicated region
    $region37: #{tpu_custom_call.1} parent=5 // pred_check
      %p453 = pneg %p452
    $region38: #{tpu_custom_call.1} parent=5 // pred_check_branch
      %455 = sbr.rel (%p453) target = $region40
    $region39: #{tpu_custom_call.1} parent=5 // pred_region
      %s456 = ssub.s32 %s10, 2
      // Predicated region
      $region41: #{tpu_custom_call.1} parent=39 // pred_check
        %p457 = pneg %p107
      $region42: #{tpu_custom_call.1} parent=39 // pred_check_branch
        %459 = sbr.rel (%p457) target = $region44
      $region43: #{tpu_custom_call.1} parent=39 // pred_region
        %s460 = smul.u32 6, %s16
        %p461 = scmp.lt.s32.totalorder %s460, 11
        %s462 = scalar_select %p461, %s460, 11
        %s463 = smul.addr %s462, 8
        %s464 = scalar_lea.vmem %s3, %s463
      $region44: #{tpu_custom_call.1} parent=39 // pred_fallthru
        _
    $region40: #{tpu_custom_call.1} parent=5 // pred_fallthru
      _
  $region6: #{tpu_custom_call.1} parent=0 // loop_footer
    %s14 = sadd.s32 1, %s10
  $region7: #{tpu_custom_call.1} parent=0 // loop_footer_branch
    %9 = sbr.rel target = $region3
  $region8: #{tpu_custom_call.1} parent=0 // loop_exit
    _

</llo_original>
